<compile_context>
chip_gen: v7x
topology: tpu7x:2x2x1
jax: 0.10.0
libtpu: 0.0.40
codegen_flags: <defaults>
</compile_context>

<pallas_src>
import functools

import jax
import jax.numpy as jnp
from jax.experimental import pallas as pl
from jax.experimental.pallas import tpu as pltpu

_LANE = 128  # TPU lane width


def _sublane_multiple(dtype) -> int:
    """Native sublane packing: 8 rows for 32-bit, 16 for 16-bit, 32 for 8-bit dtypes."""
    itemsize = jnp.dtype(dtype).itemsize
    return max(8, 32 // max(1, itemsize))


def _clipped_relu_kernel(x_ref, o_ref, *, clamp):
    # max(max(0, x), c) == max(x, max(0, c)); the fold is done at trace time.
    x = x_ref[...]
    o_ref[...] = jnp.maximum(x, jnp.asarray(clamp, dtype=x.dtype))


def _choose_block_rows(rows, sub):
    """Pick a sublane-aligned block-row count: ~8 grid steps, 512..4096 rows."""
    max_br = 4096      # <= 2 MiB/buffer for f32 -> 4x (in+out double-buffered) fits v5e's 16 MiB
    min_br = 512       # per-step DMA large enough to amortize the ~0.35 us grid-step overhead
    target_steps = 8   # keep the pipeline warm; enough steps to split over v7x's 2 TensorCores
    br = pl.cdiv(rows, target_steps)
    br = ((br + sub - 1) // sub) * sub
    br = max(min_br, min(br, max_br))
    br = min(br, rows)
    br = ((br + sub - 1) // sub) * sub
    return br


def _tiled_call(kernel, x2, rows, br, dtype, aliases):
    return pl.pallas_call(
        kernel,
        out_shape=jax.ShapeDtypeStruct((rows, _LANE), dtype),
        grid_spec=pltpu.PrefetchScalarGridSpec(
            num_scalar_prefetch=0,
            grid=(pl.cdiv(rows, br),),
            in_specs=[pl.BlockSpec((br, _LANE), lambda i: (i, 0))],
            out_specs=pl.BlockSpec((br, _LANE), lambda i: (i, 0)),
        ),
        compiler_params=pltpu.CompilerParams(
            dimension_semantics=("parallel",),
        ),
        input_output_aliases=aliases,
    )(x2)


def clipped_relu(x, ceiling=10.0, *, donate_input=False):
    """Elementwise max(max(0, x), ceiling), matching the PyTorch ClippedReLU module."""
    orig_shape = x.shape
    dtype = x.dtype
    total = int(x.size)
    if total == 0:
        return x

    clamp = float(max(0.0, float(ceiling)))
    kernel = functools.partial(_clipped_relu_kernel, clamp=clamp)

    sub = _sublane_multiple(dtype)
    tile_elems = sub * _LANE
    itemsize = jnp.dtype(dtype).itemsize
    aliases = {0: 0} if donate_input else {}

    flat = x.reshape(-1)  # free

    if total % tile_elems == 0:
        # Fast path: free reshape to native (rows, 128) tiles; pipelined, no pad/slice.
        rows = total // _LANE
        br = _choose_block_rows(rows, sub)
        out = _tiled_call(kernel, flat.reshape(rows, _LANE), rows, br, dtype, aliases)
        return out.reshape(orig_shape)

    if total * itemsize <= 2 * 1024 * 1024:
        # Ragged but small: one block equal to the full array (bypasses the (8,128)
        # tiling constraint). No pad, no slice -> no extra HBM traffic.
        x2 = flat.reshape(1, total)
        out = pl.pallas_call(
            kernel,
            out_shape=jax.ShapeDtypeStruct((1, total), dtype),
            grid_spec=pltpu.PrefetchScalarGridSpec(
                num_scalar_prefetch=0,
                grid=(1,),
                in_specs=[pl.BlockSpec((1, total), lambda i: (0, 0))],
                out_specs=pl.BlockSpec((1, total), lambda i: (0, 0)),
            ),
            input_output_aliases=aliases,
        )(x2)
        return out.reshape(orig_shape)

    # Ragged AND large (rare): pad the tail up to one native tile, tile, slice back.
    # TODO(synk): replace pad+slice with in-kernel tail masking (pl.when on the last
    # block + masked store) to avoid the extra HBM read+write on this path.
    rows = ((pl.cdiv(total, _LANE) + sub - 1) // sub) * sub
    padded_total = rows * _LANE
    flat = jnp.pad(flat, (0, padded_total - total))
    br = _choose_block_rows(rows, sub)
    out = _tiled_call(kernel, flat.reshape(rows, _LANE), rows, br, dtype, {})
    return out.reshape(-1)[:total].reshape(orig_shape)


def _reference(x, ceiling):
    # Exact PyTorch semantics: max(max(0, x), ceiling)
    return jnp.maximum(jnp.maximum(jnp.zeros_like(x), x),
                       jnp.full(x.shape, ceiling, dtype=x.dtype))


if __name__ == "__main__":
    ceiling = 10.0

    # Main test: NCHW input, small shape consistent with the module's usage.
    x = jax.random.normal(jax.random.PRNGKey(0), (2, 4, 16, 16), dtype=jnp.float32) * 20.0
    out = jax.block_until_ready(clipped_relu(x, ceiling=ceiling))
    ref = _reference(x, ceiling)
    assert out.shape == x.shape and out.dtype == x.dtype
    assert jnp.allclose(out, ref), "mismatch vs reference (aligned f32 case)"

    # Ragged-size test: exercises the no-pad single-block path (1155 elems).
    y = jax.random.normal(jax.random.PRNGKey(1), (3, 5, 7, 11), dtype=jnp.float32) * 20.0
    out_y = jax.block_until_ready(clipped_relu(y, ceiling=ceiling))
    ref_y = _reference(y, ceiling)
    assert out_y.shape == y.shape and out_y.dtype == y.dtype
    assert jnp.allclose(out_y, ref_y), "mismatch vs reference (ragged case)"

    # bf16 test: exercises the dtype-aware sublane (16-row) alignment.
    z = (jax.random.normal(jax.random.PRNGKey(2), (2, 4, 16, 16), dtype=jnp.float32) * 20.0
         ).astype(jnp.bfloat16)
    out_z = jax.block_until_ready(clipped_relu(z, ceiling=ceiling))
    ref_z = _reference(z, ceiling)
    assert out_z.shape == z.shape and out_z.dtype == z.dtype
    assert jnp.array_equal(out_z, ref_z), "mismatch vs reference (bf16 case)"

    print("KERNEL_OK")
</pallas_src>

<mosaic_0001>
module attributes {stable_mosaic.version = 11 : i64} {
  func.func @_clipped_relu_kernel(%arg0: i32, %arg1: memref<16x128xf32, #tpu.memory_space<vmem>>, %arg2: memref<16x128xf32, #tpu.memory_space<vmem>>) attributes {dimension_semantics = [#tpu.dimension_semantics<parallel>], iteration_bounds = array<i64: 1>, scalar_prefetch = 0 : i64, scratch_operands = 0 : i64, tpu.core_type = #tpu.core_type<tc>, window_params = [{transform_indices = @transform_0, window_bounds = array<i64: 16, 128>}, {transform_indices = @transform_1, window_bounds = array<i64: 16, 128>}]} {
    %c0 = arith.constant 0 : index
    %c0_0 = arith.constant 0 : index
    %0 = vector.load %arg1[%c0, %c0_0] : memref<16x128xf32, #tpu.memory_space<vmem>>, vector<16x128xf32>
    %cst = arith.constant 1.000000e+01 : f32
    %1 = vector.broadcast %cst : f32 to vector<16x128xf32>
    %2 = arith.maximumf %0, %1 : vector<16x128xf32>
    %c0_1 = arith.constant 0 : index
    %c0_2 = arith.constant 0 : index
    %3 = vector.load %arg2[%c0_1, %c0_2] : memref<16x128xf32, #tpu.memory_space<vmem>>, vector<16x128xf32>
    tpu.vector_store %arg2[%c0_1, %c0_2], %2 {strides = array<i32>} : memref<16x128xf32, #tpu.memory_space<vmem>>, vector<16x128xf32>,
    return
  }
  func.func @transform_0(%arg0: i32) -> (i32, i32) {
    %c0_i32 = arith.constant 0 : i32
    %c0_i32_0 = arith.constant 0 : i32
    return %arg0, %c0_i32 : i32, i32
  }
  func.func @transform_1(%arg0: i32) -> (i32, i32) {
    %c0_i32 = arith.constant 0 : i32
    %c0_i32_0 = arith.constant 0 : i32
    return %arg0, %c0_i32 : i32, i32
  }
}

</mosaic_0001>

<llo_original>
// kernel: tpu_custom_call.1
$region0: #{tpu_custom_call.1}
  #allocation0 [shape = 'u32[]', space=smem, size = 0x4, offset = 0x4, fixed_abs, tag = 'smem constant byte address 0x4 - core index']
  #allocation1 [shape = 'u32[144,128]{1,0:T(1,128)}', space=vmem, size = 0x12000, scoped, tag = 'internal scratch']
  %s0 = inlined_call_operand.hbm [shape: f32[16,128], index: 0, kind: input, shape index: {}]
  %s1 = inlined_call_operand.hbm [shape: f32[16,128], index: 1, kind: output, shape index: {}]
  %s2 = sld [smem:[#allocation0]]
  $region18: #{tpu_custom_call.1} parent=0
    _
  %s4 = ssub.s32 1, %s2
  %s5 = scalar_select 0, %s4, %s2
  $region1: #{tpu_custom_call.1} parent=0
    #allocation2 [shape = 'u8[8192]{0}', space=vmem, size = 0x2000, scoped, tag = 'input window, operand 0, single buffered']
    #allocation3 [shape = 's32[1]{0}', space=sflag, size = 0x4, scoped, tag = 'scoped memory for tpu_custom_call.1']
    #allocation4 [shape = 's32[1]{0}', space=sflag, size = 0x4, scoped, tag = 'scoped memory for tpu_custom_call.1']
    #allocation5 [shape = 'u8[8192]{0}', space=vmem, size = 0x2000, scoped, tag = 'output window, operand 0, single buffered']
    %6 = vsyncpa [#allocation3], 0
    %7 = vsyncpa [#allocation4], 0
    // Predicated region
    $region2: #{tpu_custom_call.1} parent=1 // pred_check
      _
    $region3: #{tpu_custom_call.1} parent=1 // pred_check_branch
      %9 = sbr.rel (0) target = $region5
    $region4: #{tpu_custom_call.1} parent=1 // pred_region
      %s11 = ssub.s32 256, 256
      %12 = vsyncadd [#allocation3], %s11
      %s13 = sshll.u32 [#allocation2], 4
      %s14 = int_to_ptr.vmem [resolvable:$true] %s13
      %19 = dma.hbm_to_vmem [thread:$0]  %s0, 256, %s14, [#allocation3], 128, 128, 8
    $region5: #{tpu_custom_call.1} parent=1 // pred_fallthru
      _
    // Predicated region
    $region6: #{tpu_custom_call.1} parent=1 // pred_check
      _
    $region7: #{tpu_custom_call.1} parent=1 // pred_check_branch
      %21 = sbr.rel (0) target = $region9
    $region8: #{tpu_custom_call.1} parent=1 // pred_region
      %22 = dma.done [#allocation3], 256
    $region9: #{tpu_custom_call.1} parent=1 // pred_fallthru
      _
    %v23 = vld [vmem:[#allocation2] sm:$0xff]
    %v24 = vld [vmem:[#allocation2 + $0x8] sm:$0xff]
    %v25 = vmax.f32 %v23, 10.0
    %v26 = vmax.f32 %v24, 10.0
    %27 = vst [vmem:[#allocation5] sm:$0xff] %v25
    %28 = vst [vmem:[#allocation5 + $0x8] sm:$0xff] %v26
    // Predicated region
    $region10: #{tpu_custom_call.1} parent=1 // pred_check
      _
    $region11: #{tpu_custom_call.1} parent=1 // pred_check_branch
      %30 = sbr.rel (0) target = $region13
    $region12: #{tpu_custom_call.1} parent=1 // pred_region
      %s32 = ssub.s32 256, 256
      %33 = vsyncadd [#allocation4], %s32
      %s34 = sshll.u32 [#allocation5], 4
      %s35 = int_to_ptr.vmem [resolvable:$true] %s34
      %40 = dma.vmem_to_hbm [thread:$0]  %s35, 256, %s1, [#allocation4], 128, 128, 8
    $region13: #{tpu_custom_call.1} parent=1 // pred_fallthru
      _
    // Predicated region
    $region14: #{tpu_custom_call.1} parent=1 // pred_check
      _
    $region15: #{tpu_custom_call.1} parent=1 // pred_check_branch
      %42 = sbr.rel (0) target = $region17
    $region16: #{tpu_custom_call.1} parent=1 // pred_region
      %43 = dma.done [#allocation4], 256
    $region17: #{tpu_custom_call.1} parent=1 // pred_fallthru
      _
    %44 = vsyncpa [#allocation3], 1
    %45 = vsyncpa [#allocation4], 1

</llo_original>
